<compile_context>
chip_gen: v7x
topology: tpu7x:2x2x1
jax: 0.10.0
libtpu: 0.0.40
codegen_flags: <defaults>
</compile_context>

<pallas_src>
import jax
import jax.numpy as jnp
from jax.experimental import pallas as pl
from jax.experimental.pallas import tpu as pltpu


# ---- alignment / tiling constants -------------------------------------------
K_ALIGN = 256        # MXU K alignment (v6e/v7x 256-wide; multiple of v5e's 128)
OUT_ALIGN = 128      # lane-dense output width
B_ALIGN = 16         # bf16 packs 16 rows per sublane tile
TK_CAP = 8192        # upper bound on the K tile for scaled-up models


def _round_up(x, m):
    return (x + m - 1) // m * m


def _vmem_capacity_bytes():
    try:
        return int(pltpu.get_tpu_info().vmem_capacity_bytes)
    except Exception:
        return 64 * 1024 * 1024          # conservative (v7x-sized)


def _vmem_limit(needed_bytes):
    cap = _vmem_capacity_bytes()
    return int(min((3 * cap) // 4, max(2 * needed_bytes, 16 * 1024 * 1024)))


def _choose_tk(hidden, w1_bytes_per_elem=1):
    """K tile such that the double-buffered W1 block fits a chip-aware budget."""
    budget = min(_vmem_capacity_bytes() // 4, 24 * 1024 * 1024)   # v7x-safe
    tk = budget // (2 * hidden * w1_bytes_per_elem)
    tk = max(K_ALIGN, (tk // K_ALIGN) * K_ALIGN)
    return min(tk, TK_CAP)


# ---- kernels -----------------------------------------------------------------
def _mlp_kernel_single(x_ref, w1_ref, s1_ref, b1_ref, w2_ref, b2_ref, o_ref):
    """Whole model in one shot (no grid, no accumulator) — the common case."""
    # int8 W1 -> bf16 (values in [-127,127] are exact in bf16); per-channel
    # scale is applied to the f32 accumulator before b1.
    w1 = w1_ref[...].astype(jnp.float32).astype(jnp.bfloat16)
    acc = jnp.dot(x_ref[...], w1, preferred_element_type=jnp.float32)
    h = jnp.maximum(acc * s1_ref[...] + b1_ref[...], 0.0)          # (Bp, H) f32
    z = jnp.dot(h.astype(jnp.bfloat16), w2_ref[...],
                preferred_element_type=jnp.float32) + b2_ref[...]
    o_ref[...] = jax.nn.sigmoid(z).astype(o_ref.dtype)             # (Bp, OUTp)


def _mlp_kernel_ktiled(x_ref, w1_ref, s1_ref, b1_ref, w2_ref, b2_ref, o_ref,
                       acc_ref):
    """K-tiled variant for scaled-up input sizes (reduction grid over K)."""
    k = pl.program_id(0)

    @pl.when(k == 0)
    def _():
        acc_ref[...] = jnp.zeros_like(acc_ref)

    w1 = w1_ref[...].astype(jnp.float32).astype(jnp.bfloat16)
    acc_ref[...] += jnp.dot(x_ref[...], w1, preferred_element_type=jnp.float32)

    @pl.when(k == pl.num_programs(0) - 1)
    def _():
        h = jnp.maximum(acc_ref[...] * s1_ref[...] + b1_ref[...], 0.0)
        z = jnp.dot(h.astype(jnp.bfloat16), w2_ref[...],
                    preferred_element_type=jnp.float32) + b2_ref[...]
        o_ref[...] = jax.nn.sigmoid(z).astype(o_ref.dtype)


# ---- parameter preparation (run once, amortized across forward calls) --------
def prepare_params(w1, b1, w2, b2):
    """Quantize/cast/pad parameters for the kernel (one-time cost).

    w1: (in_size, hidden), b1: (hidden,) or (1, hidden),
    w2: (hidden, out_size), b2: (out_size,) or (1, out_size)
    (PyTorch nn.Linear weights transposed so the kernel computes x @ W + b.)
    """
    in_size, hidden = w1.shape
    out_size = w2.shape[1]
    out_pad = _round_up(out_size, OUT_ALIGN)

    tk_cap = _choose_tk(hidden, w1_bytes_per_elem=1)   # int8 W1
    k_pad = _round_up(in_size, K_ALIGN)
    if k_pad > tk_cap:
        tk = tk_cap
        k_pad = _round_up(in_size, tk)
    else:
        tk = k_pad

    w1f = jnp.asarray(w1, jnp.float32)
    # Symmetric per-hidden-channel int8 quantization of W1.
    s1 = jnp.maximum(jnp.max(jnp.abs(w1f), axis=0, keepdims=True), 1e-12) / 127.0
    w1q = jnp.clip(jnp.round(w1f / s1), -127, 127).astype(jnp.int8)
    w1p = jnp.zeros((k_pad, hidden), jnp.int8).at[:in_size, :].set(w1q)

    b1p = jnp.asarray(b1, jnp.float32).reshape(1, hidden)
    w2p = jnp.zeros((hidden, out_pad), jnp.bfloat16)
    w2p = w2p.at[:, :out_size].set(jnp.asarray(w2, jnp.float32).astype(jnp.bfloat16))
    b2p = jnp.zeros((1, out_pad), jnp.float32)
    b2p = b2p.at[:, :out_size].set(jnp.asarray(b2, jnp.float32).reshape(1, out_size))

    return {"w1": w1p, "s1": s1, "b1": b1p, "w2": w2p, "b2": b2p,
            "in_size": in_size, "hidden": hidden, "out_size": out_size,
            "k_pad": k_pad, "tk": tk, "out_pad": out_pad}


# ---- forward -----------------------------------------------------------------
def coordinator_forward(activity, params, num_units):
    """Pallas implementation of CoordinatorPolicyNetwork.forward.

    activity: (B, ...) flattened to (B, input_size) like PyTorch's
              .view(batch, -1); a 1-D input gets an implicit batch of 1.
    returns:  (B, num_units, num_units) connection probabilities (f32).
    """
    if activity.ndim == 1:
        activity = activity[None, :]
    batch = activity.shape[0]
    x = activity.reshape(batch, -1)

    in_size, hidden = params["in_size"], params["hidden"]
    out_size, out_pad = params["out_size"], params["out_pad"]
    k_pad, tk = params["k_pad"], params["tk"]
    assert x.shape[1] == in_size, "activity does not match coordinator input size"
    assert out_size == num_units * num_units, "output size != num_units**2"

    b_pad = _round_up(batch, B_ALIGN)
    # bf16 cast + zero-pad in one fusible op: (batch, in_size) -> (b_pad, k_pad)
    xp = jnp.pad(x.astype(jnp.bfloat16),
                 ((0, b_pad - batch), (0, k_pad - in_size)))

    nk = k_pad // tk
    args = (xp, params["w1"], params["s1"], params["b1"], params["w2"], params["b2"])
    out_shape = jax.ShapeDtypeStruct((b_pad, out_pad), jnp.float32)

    if nk == 1:
        # Common case: whole model fits comfortably in VMEM.  No grid, no
        # accumulator scratch, no pl.when.
        needed = (b_pad * k_pad * 2 + k_pad * hidden            # x bf16 + W1 int8
                  + hidden * out_pad * 2 + b_pad * out_pad * 4  # W2 bf16 + out f32
                  + 8 * hidden * 4 + 8 * out_pad * 4)           # s1/b1/b2 (padded)
        vmem = pl.BlockSpec(memory_space=pltpu.MemorySpace.VMEM)
        out = pl.pallas_call(
            _mlp_kernel_single,
            out_shape=out_shape,
            in_specs=[vmem] * 6,
            out_specs=vmem,
            compiler_params=pltpu.CompilerParams(
                vmem_limit_bytes=_vmem_limit(needed)),
        )(*args)
    else:
        # Scaled-up input size: K-reduction grid with f32 VMEM accumulator.
        keep = pl.Buffered(1)   # constant-index blocks: no double buffering
        needed = (2 * (b_pad * tk * 2 + tk * hidden)            # x/W1 double-buffered
                  + b_pad * hidden * 4                          # accumulator
                  + hidden * out_pad * 2 + b_pad * out_pad * 4
                  + 8 * hidden * 4 + 8 * out_pad * 4)
        out = pl.pallas_call(
            _mlp_kernel_ktiled,
            out_shape=out_shape,
            grid_spec=pltpu.PrefetchScalarGridSpec(
                num_scalar_prefetch=0,
                grid=(nk,),                                     # K-reduction axis
                in_specs=[
                    pl.BlockSpec((b_pad, tk), lambda k: (0, k)),            # x
                    pl.BlockSpec((tk, hidden), lambda k: (k, 0)),           # W1 int8
                    pl.BlockSpec((1, hidden), lambda k: (0, 0),
                                 pipeline_mode=keep),                       # s1
                    pl.BlockSpec((1, hidden), lambda k: (0, 0),
                                 pipeline_mode=keep),                       # b1
                    pl.BlockSpec((hidden, out_pad), lambda k: (0, 0),
                                 pipeline_mode=keep),                       # W2
                    pl.BlockSpec((1, out_pad), lambda k: (0, 0),
                                 pipeline_mode=keep),                       # b2
                ],
                out_specs=pl.BlockSpec((b_pad, out_pad), lambda k: (0, 0)),
                scratch_shapes=[pltpu.VMEM((b_pad, hidden), jnp.float32)],
            ),
            compiler_params=pltpu.CompilerParams(
                dimension_semantics=("arbitrary",),             # reduction axis
                vmem_limit_bytes=_vmem_limit(needed)),
        )(*args)
        # TODO(synk): once env steps are batched, add a leading "parallel"
        #             batch grid axis so v7x's 2 TensorCores split the work.

    return out[:batch, :out_size].reshape(batch, num_units, num_units)


# ---- init (matches the PyTorch module's shapes) -------------------------------
def init_params(key, num_units, neurons_per_unit, timesteps=50, hidden=128):
    input_size = num_units * timesteps * neurons_per_unit
    output_size = num_units * num_units
    k1, k2, k3, k4 = jax.random.split(key, 4)
    lim1 = 1.0 / jnp.sqrt(input_size)
    lim2 = 1.0 / jnp.sqrt(hidden)
    w1 = jax.random.uniform(k1, (input_size, hidden), jnp.float32, -lim1, lim1)
    b1 = jax.random.uniform(k2, (1, hidden), jnp.float32, -lim1, lim1)
    w2 = jax.random.uniform(k3, (hidden, output_size), jnp.float32, -lim2, lim2)
    b2 = jax.random.uniform(k4, (1, output_size), jnp.float32, -lim2, lim2)
    return w1, b1, w2, b2


if __name__ == "__main__":
    num_units = 4
    neurons_per_unit = 8
    timesteps = 50
    batch = 2

    key = jax.random.PRNGKey(0)
    pkey, xkey = jax.random.split(key)
    w1, b1, w2, b2 = init_params(pkey, num_units, neurons_per_unit, timesteps)
    params = prepare_params(w1, b1, w2, b2)   # one-time quantize/pad (amortized)

    # activity: (B, num_units, timesteps, neurons_per_unit) -> flattened in fwd
    activity = jax.random.normal(
        xkey, (batch, num_units, timesteps, neurons_per_unit), jnp.float32)

    probs = coordinator_forward(activity, params, num_units)
    probs = jax.block_until_ready(probs)

    # sanity check against plain-JAX f32 reference
    # (bf16 x / int8 W1 / bf16 W2 => loose tolerance on the probabilities)
    x_flat = activity.reshape(batch, -1)
    ref = jax.nn.sigmoid(
        jnp.maximum(x_flat @ w1 + b1, 0.0) @ w2 + b2
    ).reshape(batch, num_units, num_units)
    assert probs.shape == (batch, num_units, num_units)
    assert bool(jnp.all(jnp.isfinite(probs)))
    assert jnp.allclose(probs, ref, atol=3e-2), "mismatch vs JAX reference"
    print("KERNEL_OK")
</pallas_src>

<mosaic_0001>
module attributes {stable_mosaic.version = 11 : i64} {
  func.func @_mlp_kernel_single(%arg0: memref<16x1792xbf16, #tpu.memory_space<vmem>>, %arg1: memref<1792x128xi8, #tpu.memory_space<vmem>>, %arg2: memref<1x128xf32, #tpu.memory_space<vmem>>, %arg3: memref<1x128xf32, #tpu.memory_space<vmem>>, %arg4: memref<128x128xbf16, #tpu.memory_space<vmem>>, %arg5: memref<1x128xf32, #tpu.memory_space<vmem>>, %arg6: memref<16x128xf32, #tpu.memory_space<vmem>>) attributes {dimension_semantics = [], scalar_prefetch = 0 : i64, scratch_operands = 0 : i64, tpu.core_type = #tpu.core_type<tc>} {
    %c0 = arith.constant 0 : index
    %c0_0 = arith.constant 0 : index
    %0 = vector.load %arg1[%c0, %c0_0] : memref<1792x128xi8, #tpu.memory_space<vmem>>, vector<1792x128xi8>
    %1 = arith.sitofp %0 : vector<1792x128xi8> to vector<1792x128xf32>
    %2 = arith.truncf %1 : vector<1792x128xf32> to vector<1792x128xbf16>
    %c0_1 = arith.constant 0 : index
    %c0_2 = arith.constant 0 : index
    %3 = vector.load %arg0[%c0_1, %c0_2] : memref<16x1792xbf16, #tpu.memory_space<vmem>>, vector<16x1792xbf16>
    %cst = arith.constant dense<0.000000e+00> : vector<16x128xf32>
    %4 = tpu.matmul %3, %2, %cst {dimension_numbers = #tpu.dot_dimension_numbers<[1], [0], [0], [1], [0, 0, 1, 1], [], []>} : vector<16x1792xbf16>, vector<1792x128xbf16>, vector<16x128xf32> -> vector<16x128xf32>
    %c0_3 = arith.constant 0 : index
    %c0_4 = arith.constant 0 : index
    %5 = vector.load %arg2[%c0_3, %c0_4] : memref<1x128xf32, #tpu.memory_space<vmem>>, vector<1x128xf32>
    %6 = vector.broadcast %5 : vector<1x128xf32> to vector<16x128xf32>
    %7 = arith.mulf %4, %6 : vector<16x128xf32>
    %c0_5 = arith.constant 0 : index
    %c0_6 = arith.constant 0 : index
    %8 = vector.load %arg3[%c0_5, %c0_6] : memref<1x128xf32, #tpu.memory_space<vmem>>, vector<1x128xf32>
    %9 = vector.broadcast %8 : vector<1x128xf32> to vector<16x128xf32>
    %10 = arith.addf %7, %9 : vector<16x128xf32>
    %cst_7 = arith.constant 0.000000e+00 : f32
    %11 = vector.broadcast %cst_7 : f32 to vector<16x128xf32>
    %12 = arith.maximumf %10, %11 : vector<16x128xf32>
    %13 = arith.truncf %12 : vector<16x128xf32> to vector<16x128xbf16>
    %c0_8 = arith.constant 0 : index
    %c0_9 = arith.constant 0 : index
    %14 = vector.load %arg4[%c0_8, %c0_9] : memref<128x128xbf16, #tpu.memory_space<vmem>>, vector<128x128xbf16>
    %cst_10 = arith.constant dense<0.000000e+00> : vector<16x128xf32>
    %15 = tpu.matmul %13, %14, %cst_10 {dimension_numbers = #tpu.dot_dimension_numbers<[1], [0], [0], [1], [0, 0, 1, 1], [], []>} : vector<16x128xbf16>, vector<128x128xbf16>, vector<16x128xf32> -> vector<16x128xf32>
    %c0_11 = arith.constant 0 : index
    %c0_12 = arith.constant 0 : index
    %16 = vector.load %arg5[%c0_11, %c0_12] : memref<1x128xf32, #tpu.memory_space<vmem>>, vector<1x128xf32>
    %17 = vector.broadcast %16 : vector<1x128xf32> to vector<16x128xf32>
    %18 = arith.addf %15, %17 : vector<16x128xf32>
    %19 = arith.negf %18 : vector<16x128xf32>
    %20 = math.exp %19 : vector<16x128xf32>
    %cst_13 = arith.constant 1.000000e+00 : f32
    %21 = vector.broadcast %cst_13 : f32 to vector<16x128xf32>
    %22 = arith.addf %21, %20 : vector<16x128xf32>
    %23 = arith.divf %21, %22 : vector<16x128xf32>
    %c0_14 = arith.constant 0 : index
    %c0_15 = arith.constant 0 : index
    %24 = vector.load %arg6[%c0_14, %c0_15] : memref<16x128xf32, #tpu.memory_space<vmem>>, vector<16x128xf32>
    tpu.vector_store %arg6[%c0_14, %c0_15], %23 {strides = array<i32>} : memref<16x128xf32, #tpu.memory_space<vmem>>, vector<16x128xf32>,
    return
  }
}

</mosaic_0001>

<llo_original>
// kernel: tpu_custom_call.1
$region0: #{tpu_custom_call.1}
  #allocation0 [shape = 'u32[]', space=smem, size = 0x4, offset = 0x4, fixed_abs, tag = 'smem constant byte address 0x4 - core index']
  #allocation1 [shape = 'u32[144,128]{1,0:T(1,128)}', space=vmem, size = 0x12000, scoped, tag = 'internal scratch']
  %s0 = inlined_call_operand.hbm [shape: bf16[16,1792], index: 0, kind: input, shape index: {}]
  %s1 = inlined_call_operand.hbm [shape: s8[1792,128], index: 1, kind: input, shape index: {}]
  %s2 = inlined_call_operand.vmem [shape: f32[1,128], index: 2, kind: input, shape index: {}]
  %s3 = inlined_call_operand.vmem [shape: f32[1,128], index: 3, kind: input, shape index: {}]
  %s4 = inlined_call_operand.hbm [shape: bf16[128,128], index: 4, kind: input, shape index: {}]
  %s5 = inlined_call_operand.vmem [shape: f32[1,128], index: 5, kind: input, shape index: {}]
  %s6 = inlined_call_operand.hbm [shape: f32[16,128], index: 6, kind: output, shape index: {}]
  %s7 = sld [smem:[#allocation0]]
  $region46: #{tpu_custom_call.1} parent=0
    _
  %s9 = ssub.s32 1, %s7
  %s10 = scalar_select 0, %s9, %s7
  $region1: #{tpu_custom_call.1} parent=0
    #allocation2 [shape = 'u8[57344]{0}', space=vmem, size = 0xe000, scoped, tag = 'input window, operand 0, single buffered']
    #allocation3 [shape = 's32[1]{0}', space=sflag, size = 0x4, scoped, tag = 'scoped memory for tpu_custom_call.1']
    #allocation4 [shape = 's32[1]{0}', space=sflag, size = 0x4, scoped, tag = 'scoped memory for tpu_custom_call.1']
    #allocation5 [shape = 'u8[229376]{0}', space=vmem, size = 0x38000, scoped, tag = 'input window, operand 1, single buffered']
    #allocation6 [shape = 's32[1]{0}', space=sflag, size = 0x4, scoped, tag = 'scoped memory for tpu_custom_call.1']
    #allocation7 [shape = 'u8[32768]{0}', space=vmem, size = 0x8000, scoped, tag = 'input window, operand 4, single buffered']
    #allocation8 [shape = 'u8[8192]{0}', space=vmem, size = 0x2000, scoped, tag = 'output window, operand 0, single buffered']
    %11 = vsyncpa [#allocation3], 0
    %12 = vsyncpa [#allocation6], 0
    %13 = vsyncpa [#allocation4], 0
    // Predicated region
    $region2: #{tpu_custom_call.1} parent=1 // pred_check
      _
    $region3: #{tpu_custom_call.1} parent=1 // pred_check_branch
      %15 = sbr.rel (0) target = $region5
    $region4: #{tpu_custom_call.1} parent=1 // pred_region
      %s17 = ssub.s32 1792, 1792
      %18 = vsyncadd [#allocation3], %s17
      %s19 = sshll.u32 [#allocation2], 4
      %s20 = int_to_ptr.vmem [resolvable:$true] %s19
      %25 = dma.hbm_to_vmem [thread:$0]  %s0, 1792, %s20, [#allocation3], 896, 896, 56
    $region5: #{tpu_custom_call.1} parent=1 // pred_fallthru
      _
    // Predicated region
    $region6: #{tpu_custom_call.1} parent=1 // pred_check
      _
    $region7: #{tpu_custom_call.1} parent=1 // pred_check_branch
      %27 = sbr.rel (0) target = $region9
    $region8: #{tpu_custom_call.1} parent=1 // pred_region
      %s29 = ssub.s32 7168, 7168
      %30 = vsyncadd [#allocation6], %s29
      %s31 = sshll.u32 [#allocation5], 4
      %s32 = int_to_ptr.vmem [resolvable:$true] %s31
      %37 = dma.hbm_to_vmem [thread:$0]  %s1, 7168, %s32, [#allocation6], 128, 128, 8
    $region9: #{tpu_custom_call.1} parent=1 // pred_fallthru
      _
    // Predicated region
    $region10: #{tpu_custom_call.1} parent=1 // pred_check
      _
    $region11: #{tpu_custom_call.1} parent=1 // pred_check_branch
      %39 = sbr.rel (0) target = $region13
    $region12: #{tpu_custom_call.1} parent=1 // pred_region
      _
    $region13: #{tpu_custom_call.1} parent=1 // pred_fallthru
      _
    // Predicated region
    $region14: #{tpu_custom_call.1} parent=1 // pred_check
      _
    $region15: #{tpu_custom_call.1} parent=1 // pred_check_branch
      %41 = sbr.rel (0) target = $region17
    $region16: #{tpu_custom_call.1} parent=1 // pred_region
      _
    $region17: #{tpu_custom_call.1} parent=1 // pred_fallthru
      _
    // Predicated region
    $region18: #{tpu_custom_call.1} parent=1 // pred_check
      _
    $region19: #{tpu_custom_call.1} parent=1 // pred_check_branch
      %43 = sbr.rel (0) target = $region21
    $region20: #{tpu_custom_call.1} parent=1 // pred_region
      %s45 = ssub.s32 1024, 1024
      %46 = vsyncadd [#allocation6], %s45
      %s47 = sshll.u32 [#allocation7], 4
      %s48 = int_to_ptr.vmem [resolvable:$true] %s47
      %53 = dma.hbm_to_vmem [thread:$0]  %s4, 1024, %s48, [#allocation6], 64, 64, 4
    $region21: #{tpu_custom_call.1} parent=1 // pred_fallthru
      _
    // Predicated region
    $region22: #{tpu_custom_call.1} parent=1 // pred_check
      _
    $region23: #{tpu_custom_call.1} parent=1 // pred_check_branch
      %55 = sbr.rel (0) target = $region25
    $region24: #{tpu_custom_call.1} parent=1 // pred_region
      _
    $region25: #{tpu_custom_call.1} parent=1 // pred_fallthru
      _
    // Predicated region
    $region26: #{tpu_custom_call.1} parent=1 // pred_check
      _
    $region27: #{tpu_custom_call.1} parent=1 // pred_check_branch
      %57 = sbr.rel (0) target = $region29
    $region28: #{tpu_custom_call.1} parent=1 // pred_region
      %58 = dma.done [#allocation3], 1792
    $region29: #{tpu_custom_call.1} parent=1 // pred_fallthru
      _
    // Predicated region
    $region30: #{tpu_custom_call.1} parent=1 // pred_check
      _
    $region31: #{tpu_custom_call.1} parent=1 // pred_check_branch
      %60 = sbr.rel (0) target = $region33
    $region32: #{tpu_custom_call.1} parent=1 // pred_region
      %61 = dma.done [#allocation6], 7168
    $region33: #{tpu_custom_call.1} parent=1 // pred_fallthru
      _
    // Predicated region
    $region34: #{tpu_custom_call.1} parent=1 // pred_check
      _
    $region35: #{tpu_custom_call.1} parent=1 // pred_check_branch
      %63 = sbr.rel (0) target = $region37
    $region36: #{tpu_custom_call.1} parent=1 // pred_region
      %64 = dma.done [#allocation6], 1024
    $region37: #{tpu_custom_call.1} parent=1 // pred_fallthru
      _
    %v66 = vld [vmem:[#allocation5] sm:$0xff]
    %v67 = vld [vmem:[#allocation5 + $0x8] sm:$0xff]
    %v68 = vld [vmem:[#allocation5 + $0x10] sm:$0xff]
    %v69 = vld [vmem:[#allocation5 + $0x18] sm:$0xff]
    %v70 = vld [vmem:[#allocation5 + $0x20] sm:$0xff]
    %v71 = vld [vmem:[#allocation5 + $0x28] sm:$0xff]
    %v72 = vld [vmem:[#allocation5 + $0x30] sm:$0xff]
    %v73 = vld [vmem:[#allocation5 + $0x38] sm:$0xff]
    %v74 = vld [vmem:[#allocation5 + $0x40] sm:$0xff]
    %v75 = vld [vmem:[#allocation5 + $0x48] sm:$0xff]
    %v76 = vld [vmem:[#allocation5 + $0x50] sm:$0xff]
    %v77 = vld [vmem:[#allocation5 + $0x58] sm:$0xff]
    %v78 = vld [vmem:[#allocation5 + $0x60] sm:$0xff]
    %v79 = vld [vmem:[#allocation5 + $0x68] sm:$0xff]
    %v80 = vld [vmem:[#allocation5 + $0x70] sm:$0xff]
    %v81 = vld [vmem:[#allocation5 + $0x78] sm:$0xff]
    %v82 = vld [vmem:[#allocation5 + $0x80] sm:$0xff]
    %v83 = vld [vmem:[#allocation5 + $0x88] sm:$0xff]
    %v84 = vld [vmem:[#allocation5 + $0x90] sm:$0xff]
    %v85 = vld [vmem:[#allocation5 + $0x98] sm:$0xff]
    %v86 = vld [vmem:[#allocation5 + $0xa0] sm:$0xff]
    %v87 = vld [vmem:[#allocation5 + $0xa8] sm:$0xff]
    %v88 = vld [vmem:[#allocation5 + $0xb0] sm:$0xff]
    %v89 = vld [vmem:[#allocation5 + $0xb8] sm:$0xff]
    %v90 = vld [vmem:[#allocation5 + $0xc0] sm:$0xff]
    %v91 = vld [vmem:[#allocation5 + $0xc8] sm:$0xff]
    %v92 = vld [vmem:[#allocation5 + $0xd0] sm:$0xff]
    %v93 = vld [vmem:[#allocation5 + $0xd8] sm:$0xff]
    %v94 = vld [vmem:[#allocation5 + $0xe0] sm:$0xff]
    %v95 = vld [vmem:[#allocation5 + $0xe8] sm:$0xff]
    %v96 = vld [vmem:[#allocation5 + $0xf0] sm:$0xff]
    %v97 = vld [vmem:[#allocation5 + $0xf8] sm:$0xff]
    %v98 = vld [vmem:[#allocation5 + $0x100] sm:$0xff]
    %v99 = vld [vmem:[#allocation5 + $0x108] sm:$0xff]
    %v100 = vld [vmem:[#allocation5 + $0x110] sm:$0xff]
    %v101 = vld [vmem:[#allocation5 + $0x118] sm:$0xff]
    %v102 = vld [vmem:[#allocation5 + $0x120] sm:$0xff]
    %v103 = vld [vmem:[#allocation5 + $0x128] sm:$0xff]
    %v104 = vld [vmem:[#allocation5 + $0x130] sm:$0xff]
    %v105 = vld [vmem:[#allocation5 + $0x138] sm:$0xff]
    %v106 = vld [vmem:[#allocation5 + $0x140] sm:$0xff]
    %v107 = vld [vmem:[#allocation5 + $0x148] sm:$0xff]
    %v108 = vld [vmem:[#allocation5 + $0x150] sm:$0xff]
    %v109 = vld [vmem:[#allocation5 + $0x158] sm:$0xff]
    %v110 = vld [vmem:[#allocation5 + $0x160] sm:$0xff]
    %v111 = vld [vmem:[#allocation5 + $0x168] sm:$0xff]
    %v112 = vld [vmem:[#allocation5 + $0x170] sm:$0xff]
    %v113 = vld [vmem:[#allocation5 + $0x178] sm:$0xff]
    %v114 = vld [vmem:[#allocation5 + $0x180] sm:$0xff]
    %v115 = vld [vmem:[#allocation5 + $0x188] sm:$0xff]
    %v116 = vld [vmem:[#allocation5 + $0x190] sm:$0xff]
    %v117 = vld [vmem:[#allocation5 + $0x198] sm:$0xff]
    %v118 = vld [vmem:[#allocation5 + $0x1a0] sm:$0xff]
    %v119 = vld [vmem:[#allocation5 + $0x1a8] sm:$0xff]
    %v120 = vld [vmem:[#allocation5 + $0x1b0] sm:$0xff]
    %v121 = vld [vmem:[#allocation5 + $0x1b8] sm:$0xff]
    %v122 = vunpack.c.l.s8.bf16 %v66
    %v123 = vunpack.c.h.s8.bf16 %v66
    %v124 = vunpack.c.l.s8.bf16 %v67
    %v125 = vunpack.c.h.s8.bf16 %v67
    %v126 = vunpack.c.l.s8.bf16 %v68
    %v127 = vunpack.c.h.s8.bf16 %v68
    %v128 = vunpack.c.l.s8.bf16 %v69
    %v129 = vunpack.c.h.s8.bf16 %v69
    %v130 = vunpack.c.l.s8.bf16 %v70
    %v131 = vunpack.c.h.s8.bf16 %v70
    %v132 = vunpack.c.l.s8.bf16 %v71
    %v133 = vunpack.c.h.s8.bf16 %v71
    %v134 = vunpack.c.l.s8.bf16 %v72
    %v135 = vunpack.c.h.s8.bf16 %v72
    %v136 = vunpack.c.l.s8.bf16 %v73
    %v137 = vunpack.c.h.s8.bf16 %v73
    %v138 = vunpack.c.l.s8.bf16 %v74
    %v139 = vunpack.c.h.s8.bf16 %v74
    %v140 = vunpack.c.l.s8.bf16 %v75
    %v141 = vunpack.c.h.s8.bf16 %v75
    %v142 = vunpack.c.l.s8.bf16 %v76
    %v143 = vunpack.c.h.s8.bf16 %v76
    %v144 = vunpack.c.l.s8.bf16 %v77
    %v145 = vunpack.c.h.s8.bf16 %v77
    %v146 = vunpack.c.l.s8.bf16 %v78
    %v147 = vunpack.c.h.s8.bf16 %v78
    %v148 = vunpack.c.l.s8.bf16 %v79
    %v149 = vunpack.c.h.s8.bf16 %v79
    %v150 = vunpack.c.l.s8.bf16 %v80
    %v151 = vunpack.c.h.s8.bf16 %v80
    %v152 = vunpack.c.l.s8.bf16 %v81
    %v153 = vunpack.c.h.s8.bf16 %v81
    %v154 = vunpack.c.l.s8.bf16 %v82
    %v155 = vunpack.c.h.s8.bf16 %v82
    %v156 = vunpack.c.l.s8.bf16 %v83
    %v157 = vunpack.c.h.s8.bf16 %v83
    %v158 = vunpack.c.l.s8.bf16 %v84
    %v159 = vunpack.c.h.s8.bf16 %v84
    %v160 = vunpack.c.l.s8.bf16 %v85
    %v161 = vunpack.c.h.s8.bf16 %v85
    %v162 = vunpack.c.l.s8.bf16 %v86
    %v163 = vunpack.c.h.s8.bf16 %v86
    %v164 = vunpack.c.l.s8.bf16 %v87
    %v165 = vunpack.c.h.s8.bf16 %v87
    %v166 = vunpack.c.l.s8.bf16 %v88
    %v167 = vunpack.c.h.s8.bf16 %v88
    %v168 = vunpack.c.l.s8.bf16 %v89
    %v169 = vunpack.c.h.s8.bf16 %v89
    %v170 = vunpack.c.l.s8.bf16 %v90
    %v171 = vunpack.c.h.s8.bf16 %v90
    %v172 = vunpack.c.l.s8.bf16 %v91
    %v173 = vunpack.c.h.s8.bf16 %v91
    %v174 = vunpack.c.l.s8.bf16 %v92
    %v175 = vunpack.c.h.s8.bf16 %v92
    %v176 = vunpack.c.l.s8.bf16 %v93
    %v177 = vunpack.c.h.s8.bf16 %v93
    %v178 = vunpack.c.l.s8.bf16 %v94
    %v179 = vunpack.c.h.s8.bf16 %v94
    %v180 = vunpack.c.l.s8.bf16 %v95
    %v181 = vunpack.c.h.s8.bf16 %v95
    %v182 = vunpack.c.l.s8.bf16 %v96
    %v183 = vunpack.c.h.s8.bf16 %v96
    %v184 = vunpack.c.l.s8.bf16 %v97
    %v185 = vunpack.c.h.s8.bf16 %v97
    %v186 = vunpack.c.l.s8.bf16 %v98
    %v187 = vunpack.c.h.s8.bf16 %v98
    %v188 = vunpack.c.l.s8.bf16 %v99
    %v189 = vunpack.c.h.s8.bf16 %v99
    %v190 = vunpack.c.l.s8.bf16 %v100
    %v191 = vunpack.c.h.s8.bf16 %v100
    %v192 = vunpack.c.l.s8.bf16 %v101
    %v193 = vunpack.c.h.s8.bf16 %v101
    %v194 = vunpack.c.l.s8.bf16 %v102
    %v195 = vunpack.c.h.s8.bf16 %v102
    %v196 = vunpack.c.l.s8.bf16 %v103
    %v197 = vunpack.c.h.s8.bf16 %v103
    %v198 = vunpack.c.l.s8.bf16 %v104
    %v199 = vunpack.c.h.s8.bf16 %v104
    %v200 = vunpack.c.l.s8.bf16 %v105
    %v201 = vunpack.c.h.s8.bf16 %v105
    %v202 = vunpack.c.l.s8.bf16 %v106
    %v203 = vunpack.c.h.s8.bf16 %v106
    %v204 = vunpack.c.l.s8.bf16 %v107
    %v205 = vunpack.c.h.s8.bf16 %v107
    %v206 = vunpack.c.l.s8.bf16 %v108
    %v207 = vunpack.c.h.s8.bf16 %v108
    %v208 = vunpack.c.l.s8.bf16 %v109
    %v209 = vunpack.c.h.s8.bf16 %v109
    %v210 = vunpack.c.l.s8.bf16 %v110
    %v211 = vunpack.c.h.s8.bf16 %v110
    %v212 = vunpack.c.l.s8.bf16 %v111
    %v213 = vunpack.c.h.s8.bf16 %v111
    %v214 = vunpack.c.l.s8.bf16 %v112
    %v215 = vunpack.c.h.s8.bf16 %v112
    %v216 = vunpack.c.l.s8.bf16 %v113
    %v217 = vunpack.c.h.s8.bf16 %v113
    %v218 = vunpack.c.l.s8.bf16 %v114
    %v219 = vunpack.c.h.s8.bf16 %v114
    %v220 = vunpack.c.l.s8.bf16 %v115
    %v221 = vunpack.c.h.s8.bf16 %v115
    %v222 = vunpack.c.l.s8.bf16 %v116
    %v223 = vunpack.c.h.s8.bf16 %v116
    %v224 = vunpack.c.l.s8.bf16 %v117
    %v225 = vunpack.c.h.s8.bf16 %v117
    %v226 = vunpack.c.l.s8.bf16 %v118
    %v227 = vunpack.c.h.s8.bf16 %v118
    %v228 = vunpack.c.l.s8.bf16 %v119
    %v229 = vunpack.c.h.s8.bf16 %v119
    %v230 = vunpack.c.l.s8.bf16 %v120
    %v231 = vunpack.c.h.s8.bf16 %v120
    %v232 = vunpack.c.l.s8.bf16 %v121
    %v233 = vunpack.c.h.s8.bf16 %v121
    %v234 = vld [vmem:[#allocation2] sm:$0xff]
    %v235 = vld [vmem:[#allocation2 + $0x8] sm:$0xff]
    %v236 = vld [vmem:[#allocation2 + $0x10] sm:$0xff]
    %v237 = vld [vmem:[#allocation2 + $0x18] sm:$0xff]
    %v238 = vld [vmem:[#allocation2 + $0x20] sm:$0xff]
    %v239 = vld [vmem:[#allocation2 + $0x28] sm:$0xff]
    %v240 = vld [vmem:[#allocation2 + $0x30] sm:$0xff]
    %v241 = vld [vmem:[#allocation2 + $0x38] sm:$0xff]
    %v242 = vld [vmem:[#allocation2 + $0x40] sm:$0xff]
    %v243 = vld [vmem:[#allocation2 + $0x48] sm:$0xff]
    %v244 = vld [vmem:[#allocation2 + $0x50] sm:$0xff]
    %v245 = vld [vmem:[#allocation2 + $0x58] sm:$0xff]
    %v246 = vld [vmem:[#allocation2 + $0x60] sm:$0xff]
    %v247 = vld [vmem:[#allocation2 + $0x68] sm:$0xff]
    %v262 = vunpack.c.l.b16 %v234
    %v263 = vunpack.c.h.b16 %v234
    %v264 = vunpack.c.l.b16 %v235
    %v265 = vunpack.c.h.b16 %v235
    %v266 = vunpack.c.l.b16 %v236
    %v267 = vunpack.c.h.b16 %v236
    %v268 = vunpack.c.l.b16 %v237
    %v269 = vunpack.c.h.b16 %v237
    %v270 = vunpack.c.l.b16 %v238
    %v271 = vunpack.c.h.b16 %v238
    %v272 = vunpack.c.l.b16 %v239
    %v273 = vunpack.c.h.b16 %v239
    %v274 = vunpack.c.l.b16 %v240
    %v275 = vunpack.c.h.b16 %v240
    %v276 = vunpack.c.l.b16 %v241
    %v277 = vunpack.c.h.b16 %v241
    %v278 = vunpack.c.l.b16 %v242
    %v279 = vunpack.c.h.b16 %v242
    %v280 = vunpack.c.l.b16 %v243
    %v281 = vunpack.c.h.b16 %v243
    %v282 = vunpack.c.l.b16 %v244
    %v283 = vunpack.c.h.b16 %v244
    %v284 = vunpack.c.l.b16 %v245
    %v285 = vunpack.c.h.b16 %v245
    %v286 = vunpack.c.l.b16 %v246
    %v287 = vunpack.c.h.b16 %v246
    %v288 = vunpack.c.l.b16 %v247
    %v289 = vunpack.c.h.b16 %v247
    %v290 = vpack.c.b16 %v276, %v262
    %v291 = vpack.c.b16 %v277, %v263
    %v292 = vpack.c.b16 %v278, %v264
    %v293 = vpack.c.b16 %v279, %v265
    %v294 = vpack.c.b16 %v280, %v266
    %v295 = vpack.c.b16 %v281, %v267
    %v296 = vpack.c.b16 %v282, %v268
    %v297 = vpack.c.b16 %v283, %v269
    %v298 = vpack.c.b16 %v284, %v270
    %v299 = vpack.c.b16 %v285, %v271
    %v300 = vpack.c.b16 %v286, %v272
    %v301 = vpack.c.b16 %v287, %v273
    %v302 = vpack.c.b16 %v288, %v274
    %v303 = vpack.c.b16 %v289, %v275
    %318 = vmatprep.subr.bf16.mxu0 0
    %319 = vmatpush1.bf16.msra.mxu0 %v122
    %320 = vmatprep.subr.bf16.mxu0 0
    %321 = vmatpush1.bf16.msra.mxu0 %v123
    %322 = vmatprep.subr.bf16.mxu0 0
    %323 = vmatpush1.bf16.msra.mxu0 %v124
    %324 = vmatprep.subr.bf16.mxu0 0
    %325 = vmatpush1.bf16.msra.mxu0 %v125
    %326 = vmatprep.subr.bf16.mxu0 0
    %327 = vmatpush1.bf16.msra.mxu0 %v126
    %328 = vmatprep.subr.bf16.mxu0 0
    %329 = vmatpush1.bf16.msra.mxu0 %v127
    %330 = vmatprep.subr.bf16.mxu0 0
    %331 = vmatpush1.bf16.msra.mxu0 %v128
    %332 = vmatprep.subr.bf16.mxu0 0
    %333 = vmatpush1.bf16.msra.mxu0 %v129
    %334 = vmatprep.subr.bf16.mxu0 0
    %335 = vmatpush1.bf16.msra.mxu0 %v130
    %336 = vmatprep.subr.bf16.mxu0 0
    %337 = vmatpush1.bf16.msra.mxu0 %v131
    %338 = vmatprep.subr.bf16.mxu0 0
    %339 = vmatpush1.bf16.msra.mxu0 %v132
    %340 = vmatprep.subr.bf16.mxu0 0
    %341 = vmatpush1.bf16.msra.mxu0 %v133
    %342 = vmatprep.subr.bf16.mxu0 0
    %343 = vmatpush1.bf16.msra.mxu0 %v134
    %344 = vmatprep.subr.bf16.mxu0 0
    %345 = vmatpush1.bf16.msra.mxu0 %v135
    %346 = vmatprep.subr.bf16.mxu0 0
    %347 = vmatpush1.bf16.msra.mxu0 %v136
    %348 = vmatprep.subr.bf16.mxu0 0
    %349 = vmatpush1.bf16.msra.mxu0 %v137
    %350 = vmatprep.mubr.bf16.mxu0 %v291
    %351 = vmatmul.mubr.bf16.gmra.mrb[0].mxu0 %v290
    %v352 = vpop.f32.mrb[0].mxu0
    %v353 = vadd.f32 0.0, %v352
    %v354 = vpop.f32.mrb[0].mxu0
    %v355 = vpop.f32.mrb[0].mxu0
    %v356 = vadd.f32 0.0, %v355
    %v357 = vpop.f32.mrb[0].mxu0
    %358 = vdwg.mxu0
    %359 = vmatprep.subr.bf16.mxu0 0
    %360 = vmatpush1.bf16.msra.mxu0 %v138
    %361 = vmatprep.subr.bf16.mxu0 0
    %362 = vmatpush1.bf16.msra.mxu0 %v139
    %363 = vmatprep.subr.bf16.mxu0 0
    %364 = vmatpush1.bf16.msra.mxu0 %v140
    %365 = vmatprep.subr.bf16.mxu0 0
    %366 = vmatpush1.bf16.msra.mxu0 %v141
    %367 = vmatprep.subr.bf16.mxu0 0
    %368 = vmatpush1.bf16.msra.mxu0 %v142
    %369 = vmatprep.subr.bf16.mxu0 0
    %370 = vmatpush1.bf16.msra.mxu0 %v143
    %371 = vmatprep.subr.bf16.mxu0 0
    %372 = vmatpush1.bf16.msra.mxu0 %v144
    %373 = vmatprep.subr.bf16.mxu0 0
    %374 = vmatpush1.bf16.msra.mxu0 %v145
    %375 = vmatprep.subr.bf16.mxu0 0
    %376 = vmatpush1.bf16.msra.mxu0 %v146
    %377 = vmatprep.subr.bf16.mxu0 0
    %378 = vmatpush1.bf16.msra.mxu0 %v147
    %379 = vmatprep.subr.bf16.mxu0 0
    %380 = vmatpush1.bf16.msra.mxu0 %v148
    %381 = vmatprep.subr.bf16.mxu0 0
    %382 = vmatpush1.bf16.msra.mxu0 %v149
    %383 = vmatprep.subr.bf16.mxu0 0
    %384 = vmatpush1.bf16.msra.mxu0 %v150
    %385 = vmatprep.subr.bf16.mxu0 0
    %386 = vmatpush1.bf16.msra.mxu0 %v151
    %387 = vmatprep.subr.bf16.mxu0 0
    %388 = vmatpush1.bf16.msra.mxu0 %v152
    %389 = vmatprep.subr.bf16.mxu0 0
    %390 = vmatpush1.bf16.msra.mxu0 %v153
    %391 = vmatprep.mubr.bf16.mxu0 %v293
    %392 = vmatmul.mubr.bf16.gmra.mrb[0].mxu0 %v292
    %v393 = vpop.f32.mrb[0].mxu0
    %v394 = vadd.f32 %v353, %v393
    %v395 = vpop.f32.mrb[0].mxu0
    %v396 = vpop.f32.mrb[0].mxu0
    %v397 = vadd.f32 %v356, %v396
    %v398 = vpop.f32.mrb[0].mxu0
    %399 = vdwg.mxu0
    %400 = vmatprep.subr.bf16.mxu0 0
    %401 = vmatpush1.bf16.msra.mxu0 %v154
    %402 = vmatprep.subr.bf16.mxu0 0
    %403 = vmatpush1.bf16.msra.mxu0 %v155
    %404 = vmatprep.subr.bf16.mxu0 0
    %405 = vmatpush1.bf16.msra.mxu0 %v156
    %406 = vmatprep.subr.bf16.mxu0 0
    %407 = vmatpush1.bf16.msra.mxu0 %v157
    %408 = vmatprep.subr.bf16.mxu0 0
    %409 = vmatpush1.bf16.msra.mxu0 %v158
    %410 = vmatprep.subr.bf16.mxu0 0
    %411 = vmatpush1.bf16.msra.mxu0 %v159
    %412 = vmatprep.subr.bf16.mxu0 0
    %413 = vmatpush1.bf16.msra.mxu0 %v160
    %414 = vmatprep.subr.bf16.mxu0 0
    %415 = vmatpush1.bf16.msra.mxu0 %v161
    %416 = vmatprep.subr.bf16.mxu0 0
    %417 = vmatpush1.bf16.msra.mxu0 %v162
    %418 = vmatprep.subr.bf16.mxu0 0
    %419 = vmatpush1.bf16.msra.mxu0 %v163
    %420 = vmatprep.subr.bf16.mxu0 0
    %421 = vmatpush1.bf16.msra.mxu0 %v164
    %422 = vmatprep.subr.bf16.mxu0 0
    %423 = vmatpush1.bf16.msra.mxu0 %v165
    %424 = vmatprep.subr.bf16.mxu0 0
    %425 = vmatpush1.bf16.msra.mxu0 %v166
    %426 = vmatprep.subr.bf16.mxu0 0
    %427 = vmatpush1.bf16.msra.mxu0 %v167
    %428 = vmatprep.subr.bf16.mxu0 0
    %429 = vmatpush1.bf16.msra.mxu0 %v168
    %430 = vmatprep.subr.bf16.mxu0 0
    %431 = vmatpush1.bf16.msra.mxu0 %v169
    %432 = vmatprep.mubr.bf16.mxu0 %v295
    %433 = vmatmul.mubr.bf16.gmra.mrb[0].mxu0 %v294
    %v434 = vpop.f32.mrb[0].mxu0
    %v435 = vadd.f32 %v394, %v434
    %v436 = vpop.f32.mrb[0].mxu0
    %v437 = vpop.f32.mrb[0].mxu0
    %v438 = vadd.f32 %v397, %v437
    %v439 = vpop.f32.mrb[0].mxu0
    %440 = vdwg.mxu0
    %441 = vmatprep.subr.bf16.mxu0 0
    %442 = vmatpush1.bf16.msra.mxu0 %v170
    %443 = vmatprep.subr.bf16.mxu0 0
    %444 = vmatpush1.bf16.msra.mxu0 %v171
    %445 = vmatprep.subr.bf16.mxu0 0
    %446 = vmatpush1.bf16.msra.mxu0 %v172
    %447 = vmatprep.subr.bf16.mxu0 0
    %448 = vmatpush1.bf16.msra.mxu0 %v173
    %449 = vmatprep.subr.bf16.mxu0 0
    %450 = vmatpush1.bf16.msra.mxu0 %v174
    %451 = vmatprep.subr.bf16.mxu0 0
    %452 = vmatpush1.bf16.msra.mxu0 %v175
    %453 = vmatprep.subr.bf16.mxu0 0
    %454 = vmatpush1.bf16.msra.mxu0 %v176
    %455 = vmatprep.subr.bf16.mxu0 0
    %456 = vmatpush1.bf16.msra.mxu0 %v177
    %457 = vmatprep.subr.bf16.mxu0 0
    %458 = vmatpush1.bf16.msra.mxu0 %v178
    %459 = vmatprep.subr.bf16.mxu0 0
    %460 = vmatpush1.bf16.msra.mxu0 %v179
    %461 = vmatprep.subr.bf16.mxu0 0
    %462 = vmatpush1.bf16.msra.mxu0 %v180
    %463 = vmatprep.subr.bf16.mxu0 0
    %464 = vmatpush1.bf16.msra.mxu0 %v181
    %465 = vmatprep.subr.bf16.mxu0 0
    %466 = vmatpush1.bf16.msra.mxu0 %v182
    %467 = vmatprep.subr.bf16.mxu0 0
    %468 = vmatpush1.bf16.msra.mxu0 %v183
    %469 = vmatprep.subr.bf16.mxu0 0
    %470 = vmatpush1.bf16.msra.mxu0 %v184
    %471 = vmatprep.subr.bf16.mxu0 0
    %472 = vmatpush1.bf16.msra.mxu0 %v185
    %473 = vmatprep.mubr.bf16.mxu0 %v297
    %474 = vmatmul.mubr.bf16.gmra.mrb[0].mxu0 %v296
    %v475 = vpop.f32.mrb[0].mxu0
    %v476 = vadd.f32 %v435, %v475
    %v477 = vpop.f32.mrb[0].mxu0
    %v478 = vpop.f32.mrb[0].mxu0
    %v479 = vadd.f32 %v438, %v478
    %v480 = vpop.f32.mrb[0].mxu0
    %481 = vdwg.mxu0
    %482 = vmatprep.subr.bf16.mxu0 0
    %483 = vmatpush1.bf16.msra.mxu0 %v186
    %484 = vmatprep.subr.bf16.mxu0 0
    %485 = vmatpush1.bf16.msra.mxu0 %v187
    %486 = vmatprep.subr.bf16.mxu0 0
    %487 = vmatpush1.bf16.msra.mxu0 %v188
    %488 = vmatprep.subr.bf16.mxu0 0
    %489 = vmatpush1.bf16.msra.mxu0 %v189
    %490 = vmatprep.subr.bf16.mxu0 0
    %491 = vmatpush1.bf16.msra.mxu0 %v190
    %492 = vmatprep.subr.bf16.mxu0 0
    %493 = vmatpush1.bf16.msra.mxu0 %v191
    %494 = vmatprep.subr.bf16.mxu0 0
    %495 = vmatpush1.bf16.msra.mxu0 %v192
    %496 = vmatprep.subr.bf16.mxu0 0
    %497 = vmatpush1.bf16.msra.mxu0 %v193
    %498 = vmatprep.subr.bf16.mxu0 0
    %499 = vmatpush1.bf16.msra.mxu0 %v194
    %500 = vmatprep.subr.bf16.mxu0 0
    %501 = vmatpush1.bf16.msra.mxu0 %v195
    %502 = vmatprep.subr.bf16.mxu0 0
    %503 = vmatpush1.bf16.msra.mxu0 %v196
    %504 = vmatprep.subr.bf16.mxu0 0
    %505 = vmatpush1.bf16.msra.mxu0 %v197
    %506 = vmatprep.subr.bf16.mxu0 0
    %507 = vmatpush1.bf16.msra.mxu0 %v198
    %508 = vmatprep.subr.bf16.mxu0 0
    %509 = vmatpush1.bf16.msra.mxu0 %v199
    %510 = vmatprep.subr.bf16.mxu0 0
    %511 = vmatpush1.bf16.msra.mxu0 %v200
    %512 = vmatprep.subr.bf16.mxu0 0
    %513 = vmatpush1.bf16.msra.mxu0 %v201
    %514 = vmatprep.mubr.bf16.mxu0 %v299
    %515 = vmatmul.mubr.bf16.gmra.mrb[0].mxu0 %v298
    %v516 = vpop.f32.mrb[0].mxu0
    %v517 = vadd.f32 %v476, %v516
    %v518 = vpop.f32.mrb[0].mxu0
    %v519 = vpop.f32.mrb[0].mxu0
    %v520 = vadd.f32 %v479, %v519
    %v521 = vpop.f32.mrb[0].mxu0
    %522 = vdwg.mxu0
    %523 = vmatprep.subr.bf16.mxu0 0
    %524 = vmatpush1.bf16.msra.mxu0 %v202
    %525 = vmatprep.subr.bf16.mxu0 0
    %526 = vmatpush1.bf16.msra.mxu0 %v203
    %527 = vmatprep.subr.bf16.mxu0 0
    %528 = vmatpush1.bf16.msra.mxu0 %v204
    %529 = vmatprep.subr.bf16.mxu0 0
    %530 = vmatpush1.bf16.msra.mxu0 %v205
    %531 = vmatprep.subr.bf16.mxu0 0
    %532 = vmatpush1.bf16.msra.mxu0 %v206
    %533 = vmatprep.subr.bf16.mxu0 0
    %534 = vmatpush1.bf16.msra.mxu0 %v207
    %535 = vmatprep.subr.bf16.mxu0 0
    %536 = vmatpush1.bf16.msra.mxu0 %v208
    %537 = vmatprep.subr.bf16.mxu0 0
    %538 = vmatpush1.bf16.msra.mxu0 %v209
    %539 = vmatprep.subr.bf16.mxu0 0
    %540 = vmatpush1.bf16.msra.mxu0 %v210
    %541 = vmatprep.subr.bf16.mxu0 0
    %542 = vmatpush1.bf16.msra.mxu0 %v211
    %543 = vmatprep.subr.bf16.mxu0 0
    %544 = vmatpush1.bf16.msra.mxu0 %v212
    %545 = vmatprep.subr.bf16.mxu0 0
    %546 = vmatpush1.bf16.msra.mxu0 %v213
    %547 = vmatprep.subr.bf16.mxu0 0
    %548 = vmatpush1.bf16.msra.mxu0 %v214
    %549 = vmatprep.subr.bf16.mxu0 0
    %550 = vmatpush1.bf16.msra.mxu0 %v215
    %551 = vmatprep.subr.bf16.mxu0 0
    %552 = vmatpush1.bf16.msra.mxu0 %v216
    %553 = vmatprep.subr.bf16.mxu0 0
    %554 = vmatpush1.bf16.msra.mxu0 %v217
    %555 = vmatprep.mubr.bf16.mxu0 %v301
    %556 = vmatmul.mubr.bf16.gmra.mrb[0].mxu0 %v300
    %v557 = vpop.f32.mrb[0].mxu0
    %v558 = vadd.f32 %v517, %v557
    %v559 = vpop.f32.mrb[0].mxu0
    %v560 = vpop.f32.mrb[0].mxu0
    %v561 = vadd.f32 %v520, %v560
    %v562 = vpop.f32.mrb[0].mxu0
    %563 = vdwg.mxu0
    %564 = vmatprep.subr.bf16.mxu0 0
    %565 = vmatpush1.bf16.msra.mxu0 %v218
    %566 = vmatprep.subr.bf16.mxu0 0
    %567 = vmatpush1.bf16.msra.mxu0 %v219
    %568 = vmatprep.subr.bf16.mxu0 0
    %569 = vmatpush1.bf16.msra.mxu0 %v220
    %570 = vmatprep.subr.bf16.mxu0 0
    %571 = vmatpush1.bf16.msra.mxu0 %v221
    %572 = vmatprep.subr.bf16.mxu0 0
    %573 = vmatpush1.bf16.msra.mxu0 %v222
    %574 = vmatprep.subr.bf16.mxu0 0
    %575 = vmatpush1.bf16.msra.mxu0 %v223
    %576 = vmatprep.subr.bf16.mxu0 0
    %577 = vmatpush1.bf16.msra.mxu0 %v224
    %578 = vmatprep.subr.bf16.mxu0 0
    %579 = vmatpush1.bf16.msra.mxu0 %v225
    %580 = vmatprep.subr.bf16.mxu0 0
    %581 = vmatpush1.bf16.msra.mxu0 %v226
    %582 = vmatprep.subr.bf16.mxu0 0
    %583 = vmatpush1.bf16.msra.mxu0 %v227
    %584 = vmatprep.subr.bf16.mxu0 0
    %585 = vmatpush1.bf16.msra.mxu0 %v228
    %586 = vmatprep.subr.bf16.mxu0 0
    %587 = vmatpush1.bf16.msra.mxu0 %v229
    %588 = vmatprep.subr.bf16.mxu0 0
    %589 = vmatpush1.bf16.msra.mxu0 %v230
    %590 = vmatprep.subr.bf16.mxu0 0
    %591 = vmatpush1.bf16.msra.mxu0 %v231
    %592 = vmatprep.subr.bf16.mxu0 0
    %593 = vmatpush1.bf16.msra.mxu0 %v232
    %594 = vmatprep.subr.bf16.mxu0 0
    %595 = vmatpush1.bf16.msra.mxu0 %v233
    %596 = vmatprep.mubr.bf16.mxu0 %v303
    %597 = vmatmul.mubr.bf16.gmra.mrb[0].mxu0 %v302
    %v598 = vpop.f32.mrb[0].mxu0
    %v599 = vadd.f32 %v558, %v598
    %v600 = vpop.f32.mrb[0].mxu0
    %v601 = vpop.f32.mrb[0].mxu0
    %v602 = vadd.f32 %v561, %v601
    %v603 = vpop.f32.mrb[0].mxu0
    %604 = vdwg.mxu0
    %v605 = vld [vmem:[%s2] sm:$0x1]
    %v607 = vlaneseq
    %v608 = vshrl.u32 %v607, 7
    %v609 = vsub.s32 0, %v608
    %v610 = vrot.slane %v605, %v609
    %v612 = vmul.f32 %v599, %v610
    %v613 = vmul.f32 %v602, %v610
    %v614 = vld [vmem:[%s3] sm:$0x1]
    %v616 = vlaneseq
    %v617 = vshrl.u32 %v616, 7
    %v618 = vsub.s32 0, %v617
    %v619 = vrot.slane %v614, %v618
    %v621 = vadd.f32 %v612, %v619
    %v622 = vadd.f32 %v613, %v619
    %v623 = vmax.f32 %v621, 0.0
    %v624 = vmax.f32 %v622, 0.0
    %v625 = vpack.c.bf16 %v624, %v623
    %v626 = vld [vmem:[#allocation7] sm:$0xf]
    %v627 = vld [vmem:[#allocation7 + $0x4] sm:$0xf]
    %v628 = vld [vmem:[#allocation7 + $0x8] sm:$0xf]
    %v629 = vld [vmem:[#allocation7 + $0xc] sm:$0xf]
    %v630 = vld [vmem:[#allocation7 + $0x10] sm:$0xf]
    %v631 = vld [vmem:[#allocation7 + $0x14] sm:$0xf]
    %v632 = vld [vmem:[#allocation7 + $0x18] sm:$0xf]
    %v633 = vld [vmem:[#allocation7 + $0x1c] sm:$0xf]
    %v634 = vld [vmem:[#allocation7 + $0x20] sm:$0xf]
    %v635 = vld [vmem:[#allocation7 + $0x24] sm:$0xf]
    %v636 = vld [vmem:[#allocation7 + $0x28] sm:$0xf]
    %v637 = vld [vmem:[#allocation7 + $0x2c] sm:$0xf]
    %v638 = vld [vmem:[#allocation7 + $0x30] sm:$0xf]
    %v639 = vld [vmem:[#allocation7 + $0x34] sm:$0xf]
    %v640 = vld [vmem:[#allocation7 + $0x38] sm:$0xf]
    %v641 = vld [vmem:[#allocation7 + $0x3c] sm:$0xf]
    %v642 = vld [vmem:[%s5] sm:$0x1]
    %v644 = vlaneseq
    %v645 = vshrl.u32 %v644, 7
    %v646 = vsub.s32 0, %v645
    %v647 = vrot.slane %v642, %v646
    %v665 = vunpack.c.l.b16 %v626
    %v666 = vunpack.c.l.b16 %v627
    %v667 = vunpack.c.l.b16 %v628
    %v668 = vunpack.c.l.b16 %v629
    %v669 = vunpack.c.l.b16 %v630
    %v670 = vunpack.c.l.b16 %v631
    %v671 = vunpack.c.l.b16 %v632
    %v672 = vunpack.c.l.b16 %v633
    %v673 = vunpack.c.l.b16 %v634
    %v674 = vunpack.c.l.b16 %v635
    %v675 = vunpack.c.l.b16 %v636
    %v676 = vunpack.c.l.b16 %v637
    %v677 = vunpack.c.l.b16 %v638
    %v678 = vunpack.c.l.b16 %v639
    %v679 = vunpack.c.l.b16 %v640
    %v680 = vunpack.c.l.b16 %v641
    %v681 = vpack.c.b16 %v666, %v665
    %v682 = vpack.c.b16 %v668, %v667
    %v683 = vpack.c.b16 %v670, %v669
    %v684 = vpack.c.b16 %v672, %v671
    %v685 = vpack.c.b16 %v674, %v673
    %v686 = vpack.c.b16 %v676, %v675
    %v687 = vpack.c.b16 %v678, %v677
    %v688 = vpack.c.b16 %v680, %v679
    %697 = vmatprep.subr.bf16.mxu0 0
    %698 = vmatpush1.bf16.msra.mxu0 %v681
    %699 = vmatprep.subr.bf16.mxu0 0
    %700 = vmatpush1.bf16.msra.mxu0 %v682
    %701 = vmatprep.subr.bf16.mxu0 0
    %702 = vmatpush1.bf16.msra.mxu0 %v683
    %703 = vmatprep.subr.bf16.mxu0 0
    %704 = vmatpush1.bf16.msra.mxu0 %v684
    %705 = vmatprep.subr.bf16.mxu0 0
    %706 = vmatpush1.bf16.msra.mxu0 %v685
    %707 = vmatprep.subr.bf16.mxu0 0
    %708 = vmatpush1.bf16.msra.mxu0 %v686
    %709 = vmatprep.subr.bf16.mxu0 0
    %710 = vmatpush1.bf16.msra.mxu0 %v687
    %711 = vmatprep.subr.bf16.mxu0 0
    %712 = vmatpush1.bf16.msra.mxu0 %v688
    %713 = vmatprep.subr.bf16.mxu0 0
    %714 = vmatpush1.bf16.msra.mxu0 0
    %715 = vmatprep.subr.bf16.mxu0 0
    %716 = vmatpush1.bf16.msra.mxu0 0
    %717 = vmatprep.subr.bf16.mxu0 0
    %718 = vmatpush1.bf16.msra.mxu0 0
    %719 = vmatprep.subr.bf16.mxu0 0
    %720 = vmatpush1.bf16.msra.mxu0 0
    %721 = vmatprep.subr.bf16.mxu0 0
    %722 = vmatpush1.bf16.msra.mxu0 0
    %723 = vmatprep.subr.bf16.mxu0 0
    %724 = vmatpush1.bf16.msra.mxu0 0
    %725 = vmatprep.subr.bf16.mxu0 0
    %726 = vmatpush1.bf16.msra.mxu0 0
    %727 = vmatprep.subr.bf16.mxu0 0
    %728 = vmatpush1.bf16.msra.mxu0 0
    %729 = vmatprep.mubr.bf16.mxu0 0
    %730 = vmatmul.mubr.bf16.gmra.mrb[0].mxu0 %v625
    %v731 = vpop.f32.mrb[0].mxu0
    %v732 = vadd.f32 %v647, %v731
    %v733 = vpop.f32.mrb[0].mxu0
    %v734 = vpop.f32.mrb[0].mxu0
    %v735 = vadd.f32 %v647, %v734
    %v736 = vpop.f32.mrb[0].mxu0
    %737 = vdwg.mxu0
    %v738 = vxor.u32 %v732, 2147483648
    %v739 = vxor.u32 %v735, 2147483648
    %v740 = vmul.f32 %v738, 1.442695
    %v741 = vpow.pop %v740
    %v742 = vmul.f32 %v739, 1.442695
    %v743 = vpow.pop %v742
    %v744 = vadd.f32 %v741, 1.0
    %v745 = vadd.f32 %v743, 1.0
    %v746 = vrcp.pop %v744
    %v747 = vmul.f32 1.0, %v746
    %v748 = vrcp.pop %v745
    %v749 = vmul.f32 1.0, %v748
    %750 = vst [vmem:[#allocation8] sm:$0xff] %v747
    %751 = vst [vmem:[#allocation8 + $0x8] sm:$0xff] %v749
    // Predicated region
    $region38: #{tpu_custom_call.1} parent=1 // pred_check
      _
    $region39: #{tpu_custom_call.1} parent=1 // pred_check_branch
      %753 = sbr.rel (0) target = $region41
    $region40: #{tpu_custom_call.1} parent=1 // pred_region
      %s755 = ssub.s32 256, 256
      %756 = vsyncadd [#allocation4], %s755
      %s757 = sshll.u32 [#allocation8], 4
      %s758 = int_to_ptr.vmem [resolvable:$true] %s757
      %763 = dma.vmem_to_hbm [thread:$0]  %s758, 256, %s6, [#allocation4], 128, 128, 8
    $region41: #{tpu_custom_call.1} parent=1 // pred_fallthru
      _
    // Predicated region
    $region42: #{tpu_custom_call.1} parent=1 // pred_check
      _
    $region43: #{tpu_custom_call.1} parent=1 // pred_check_branch
      %765 = sbr.rel (0) target = $region45
    $region44: #{tpu_custom_call.1} parent=1 // pred_region
      %766 = dma.done [#allocation4], 256
    $region45: #{tpu_custom_call.1} parent=1 // pred_fallthru
      _
    %767 = vsyncpa [#allocation3], 1
    %768 = vsyncpa [#allocation6], 1
    %769 = vsyncpa [#allocation4], 1

</llo_original>
